<compile_context>
chip_gen: v6e
topology: v6e:2x2x1
jax: 0.10.0
libtpu: 0.0.40
codegen_flags: <defaults>
</compile_context>

<pallas_src>
import jax
import jax.numpy as jnp
from jax.experimental import pallas as pl
from jax.experimental.pallas import tpu as pltpu

LANE = 128  # lane width of a vreg (last dim)


def _round_up(n, m):
    return ((n + m - 1) // m) * m


def _choose_batch_tile(B, requested=None):
    if requested is not None:
        return requested
    # Tiles are multiples of 16 (bf16 x/out tiles pack (16,128) vregs).
    # Prefer >= 4 grid steps with reasonably large tiles (keeps both v7x
    # TensorCores busy and lets DMA overlap compute), then >= 2 steps,
    # then any dividing tile, then the whole batch (block == full dims).
    for cand in (256, 128, 64):
        if B % cand == 0 and B // cand >= 4:
            return cand
    for cand in (256, 128, 64, 32, 16):
        if B % cand == 0 and B // cand >= 2:
            return cand
    for cand in (256, 128, 64, 32, 16):
        if B % cand == 0:
            return cand
    return B  # remainder-free fallback: single full-batch tile


def generator_kernel(x_ref, w1_ref, b1_ref, w2_ref, b2_ref, w3_ref, b3_ref,
                     o_ref):
    # bf16 MXU operands, f32 accumulation; bias-add + tanh in f32 (VPU/EUP).
    x = x_ref[...].astype(jnp.bfloat16)          # cast in-kernel, no HBM pad

    h = jnp.dot(x, w1_ref[...], preferred_element_type=jnp.float32)
    h = jnp.tanh(h + b1_ref[...])

    h = jnp.dot(h.astype(jnp.bfloat16), w2_ref[...],
                preferred_element_type=jnp.float32)
    h = jnp.tanh(h + b2_ref[...])

    h = jnp.dot(h.astype(jnp.bfloat16), w3_ref[...],
                preferred_element_type=jnp.float32)
    o_ref[...] = (h + b3_ref[...]).astype(o_ref.dtype)   # bf16 lane-dense store


def prepare_params(params):
    """One-time preparation (call at init, NOT per forward):
    pad hidden/output feature dims to 128 lanes and cast weights to bf16.
    Padded rows/cols and bias lanes are exact zeros, so padded lanes carry
    tanh(0)=0 through the network and never affect real output columns."""
    w1, b1 = params["w1"], params["b1"]   # [in,  hid], [1, hid]
    w2, b2 = params["w2"], params["b2"]   # [hid, hid], [1, hid]
    w3, b3 = params["w3"], params["b3"]   # [hid, out], [1, out]
    in_dim, hid = w1.shape
    out_dim = w3.shape[1]
    hid_p = _round_up(hid, LANE)
    out_p = _round_up(out_dim, LANE)

    def pad2(a, rows, cols):
        return jnp.pad(a, ((0, rows - a.shape[0]), (0, cols - a.shape[1])))

    return {
        "w1": pad2(w1, in_dim, hid_p).astype(jnp.bfloat16),
        "b1": pad2(b1, 1, hid_p).astype(jnp.float32),
        "w2": pad2(w2, hid_p, hid_p).astype(jnp.bfloat16),
        "b2": pad2(b2, 1, hid_p).astype(jnp.float32),
        "w3": pad2(w3, hid_p, out_p).astype(jnp.bfloat16),
        "b3": pad2(b3, 1, out_p).astype(jnp.float32),
        "out_dim": out_dim,
    }


def generator_forward(x, prepared, *, batch_tile=None):
    """x: [B, input_size] float32.  `prepared` comes from prepare_params."""
    B, in_dim = x.shape
    assert prepared["w1"].shape[0] == in_dim
    hid_p = prepared["w1"].shape[1]
    out_p = prepared["w3"].shape[1]
    out_dim = prepared["out_dim"]

    bt = _choose_batch_tile(B, batch_tile)
    assert B % bt == 0, "batch must be divisible by the requested batch_tile"
    grid = (B // bt,)

    # Advisory cost estimate for XLA's scheduler.
    flops = 2 * B * (in_dim * hid_p + hid_p * hid_p + hid_p * out_p)
    transcendentals = 2 * B * hid_p
    weight_bytes = sum(prepared[k].size for k in ("w1", "w2", "w3")) * 2
    bias_bytes = sum(prepared[k].size for k in ("b1", "b2", "b3")) * 4
    bytes_accessed = x.size * 4 + weight_bytes + bias_bytes + B * out_p * 2
    cost = pl.CostEstimate(flops=flops, transcendentals=transcendentals,
                           bytes_accessed=bytes_accessed)

    def call(single_buffer_weights):
        bufs = 1 if single_buffer_weights else 2
        vmem_est = (bufs * (weight_bytes + bias_bytes)
                    + 2 * bt * in_dim * 4        # x double-buffer (f32)
                    + 2 * bt * out_p * 2         # output double-buffer (bf16)
                    + 4 * bt * hid_p * 4)        # intermediates / headroom
        vmem_limit = int(min(64 * 1024 * 1024,
                             max(32 * 1024 * 1024, 2 * vmem_est)))

        wmode = ({"pipeline_mode": pl.Buffered(buffer_count=1)}
                 if single_buffer_weights else {})
        const = lambda i: (0, 0)
        in_specs = [
            pl.BlockSpec((bt, in_dim), lambda i: (i, 0)),           # x (f32)
            pl.BlockSpec((in_dim, hid_p), const, **wmode),          # w1 (bf16)
            pl.BlockSpec((1, hid_p), const, **wmode),               # b1 (f32)
            pl.BlockSpec((hid_p, hid_p), const, **wmode),           # w2 (bf16)
            pl.BlockSpec((1, hid_p), const, **wmode),               # b2 (f32)
            pl.BlockSpec((hid_p, out_p), const, **wmode),           # w3 (bf16)
            pl.BlockSpec((1, out_p), const, **wmode),               # b3 (f32)
        ]
        out_spec = pl.BlockSpec((bt, out_p), lambda i: (i, 0))      # lane-dense

        return pl.pallas_call(
            generator_kernel,
            out_shape=jax.ShapeDtypeStruct((B, out_p), jnp.bfloat16),
            grid_spec=pltpu.PrefetchScalarGridSpec(
                num_scalar_prefetch=0,
                grid=grid,
                in_specs=in_specs,
                out_specs=out_spec,
            ),
            compiler_params=pltpu.CompilerParams(
                dimension_semantics=("parallel",),
                vmem_limit_bytes=vmem_limit,
            ),
            cost_estimate=cost,
        )(x, prepared["w1"], prepared["b1"], prepared["w2"], prepared["b2"],
          prepared["w3"], prepared["b3"])

    try:
        out_padded = call(True)    # single-buffered constant weight blocks
    except Exception:
        out_padded = call(False)   # fallback if Buffered(1) is rejected

    # Slice the single real output column (padded lanes are exact zeros) and
    # restore f32 to match the module's semantics.  Under an outer jit this
    # slice/cast fuses with the consumer; the bf16 output already shrank it.
    return out_padded[:, :out_dim].astype(jnp.float32)
    # TODO(synk): for hidden dims where single-buffered weights exceed ~64 MiB
    # (v7x VMEM), add a K-reduction grid axis with an f32 VMEM accumulator.


def init_params(key, input_size, hidden_size, output_size):
    """Deterministic init mimicking nn.Linear default U(-1/sqrt(fan_in), +)."""
    ks = jax.random.split(key, 6)

    def linear(kw, kb, fan_in, fan_out):
        bound = 1.0 / jnp.sqrt(jnp.float32(fan_in))
        # PyTorch stores weight as [out, in]; keep transposed [in, out].
        w_t = jax.random.uniform(kw, (fan_in, fan_out), jnp.float32, -bound, bound)
        b = jax.random.uniform(kb, (1, fan_out), jnp.float32, -bound, bound)
        return w_t, b

    w1, b1 = linear(ks[0], ks[1], input_size, hidden_size)
    w2, b2 = linear(ks[2], ks[3], hidden_size, hidden_size)
    w3, b3 = linear(ks[4], ks[5], hidden_size, output_size)
    return {"w1": w1, "b1": b1, "w2": w2, "b2": b2, "w3": w3, "b3": b3}


def reference_forward_bf16(x, params):
    """Pure-JAX reference mirroring the kernel numerics (bf16 MXU operands,
    f32 accumulation, f32 tanh, bf16 output writeback)."""
    def mm(a, w):
        return jnp.dot(a.astype(jnp.bfloat16), w.astype(jnp.bfloat16),
                       preferred_element_type=jnp.float32)
    h = jnp.tanh(mm(x, params["w1"]) + params["b1"])
    h = jnp.tanh(mm(h, params["w2"]) + params["b2"])
    y = mm(h, params["w3"]) + params["b3"]
    return y.astype(jnp.bfloat16).astype(jnp.float32)


def reference_forward_f32(x, params):
    """Exact f32 reference matching the PyTorch module semantics."""
    h = jnp.tanh(x @ params["w1"] + params["b1"])
    h = jnp.tanh(h @ params["w2"] + params["b2"])
    return h @ params["w3"] + params["b3"]


if __name__ == "__main__":
    key = jax.random.PRNGKey(0)
    k_x, k_p = jax.random.split(key)

    # Small shapes consistent with the module:
    # batch=16, input=16, hidden=32, output=1.
    B, input_size, hidden_size, output_size = 16, 16, 32, 1

    x = jax.random.normal(k_x, (B, input_size), jnp.float32)
    params = init_params(k_p, input_size, hidden_size, output_size)
    prepared = prepare_params(params)   # one-time pad + bf16 cast (hoisted)

    out = generator_forward(x, prepared)
    out = jax.block_until_ready(out)
    assert out.shape == (B, output_size)

    # Check vs a reference mirroring the kernel's bf16 operand / bf16 output path.
    ref_mirror = reference_forward_bf16(x, params)
    assert jnp.allclose(out, ref_mirror, atol=1e-2, rtol=1e-2), \
        "mismatch vs bf16-mirrored reference"

    # Loose sanity check vs the exact f32 PyTorch-equivalent forward.
    ref_f32 = reference_forward_f32(x, params)
    assert jnp.allclose(out, ref_f32, atol=5e-2, rtol=5e-2), \
        "mismatch vs f32 reference"

    print("KERNEL_OK")
</pallas_src>

<mosaic_0001>
module attributes {stable_mosaic.version = 11 : i64} {
  func.func @generator_kernel(%arg0: i32, %arg1: memref<16x16xf32, #tpu.memory_space<vmem>>, %arg2: memref<16x128xbf16, #tpu.memory_space<vmem>>, %arg3: memref<1x128xf32, #tpu.memory_space<vmem>>, %arg4: memref<128x128xbf16, #tpu.memory_space<vmem>>, %arg5: memref<1x128xf32, #tpu.memory_space<vmem>>, %arg6: memref<128x128xbf16, #tpu.memory_space<vmem>>, %arg7: memref<1x128xf32, #tpu.memory_space<vmem>>, %arg8: memref<16x128xbf16, #tpu.memory_space<vmem>>) attributes {dimension_semantics = [#tpu.dimension_semantics<parallel>], iteration_bounds = array<i64: 1>, scalar_prefetch = 0 : i64, scratch_operands = 0 : i64, tpu.core_type = #tpu.core_type<tc>, window_params = [{transform_indices = @transform_0, window_bounds = array<i64: 16, 16>}, {pipeline_mode = #tpu.pipeline_mode<synchronous>, transform_indices = @transform_1, window_bounds = array<i64: 16, 128>}, {pipeline_mode = #tpu.pipeline_mode<synchronous>, transform_indices = @transform_2, window_bounds = array<i64: 1, 128>}, {pipeline_mode = #tpu.pipeline_mode<synchronous>, transform_indices = @transform_3, window_bounds = array<i64: 128, 128>}, {pipeline_mode = #tpu.pipeline_mode<synchronous>, transform_indices = @transform_4, window_bounds = array<i64: 1, 128>}, {pipeline_mode = #tpu.pipeline_mode<synchronous>, transform_indices = @transform_5, window_bounds = array<i64: 128, 128>}, {pipeline_mode = #tpu.pipeline_mode<synchronous>, transform_indices = @transform_6, window_bounds = array<i64: 1, 128>}, {transform_indices = @transform_7, window_bounds = array<i64: 16, 128>}]} {
    %c0 = arith.constant 0 : index
    %c0_0 = arith.constant 0 : index
    %0 = vector.load %arg1[%c0, %c0_0] : memref<16x16xf32, #tpu.memory_space<vmem>>, vector<16x16xf32>
    %1 = arith.truncf %0 : vector<16x16xf32> to vector<16x16xbf16>
    %c0_1 = arith.constant 0 : index
    %c0_2 = arith.constant 0 : index
    %2 = vector.load %arg2[%c0_1, %c0_2] : memref<16x128xbf16, #tpu.memory_space<vmem>>, vector<16x128xbf16>
    %cst = arith.constant dense<0.000000e+00> : vector<16x128xf32>
    %3 = tpu.matmul %1, %2, %cst {dimension_numbers = #tpu.dot_dimension_numbers<[1], [0], [0], [1], [0, 0, 1, 1], [], []>} : vector<16x16xbf16>, vector<16x128xbf16>, vector<16x128xf32> -> vector<16x128xf32>
    %c0_3 = arith.constant 0 : index
    %c0_4 = arith.constant 0 : index
    %4 = vector.load %arg3[%c0_3, %c0_4] : memref<1x128xf32, #tpu.memory_space<vmem>>, vector<1x128xf32>
    %5 = vector.broadcast %4 : vector<1x128xf32> to vector<16x128xf32>
    %6 = arith.addf %3, %5 : vector<16x128xf32>
    %7 = math.tanh %6 : vector<16x128xf32>
    %8 = arith.truncf %7 : vector<16x128xf32> to vector<16x128xbf16>
    %c0_5 = arith.constant 0 : index
    %c0_6 = arith.constant 0 : index
    %9 = vector.load %arg4[%c0_5, %c0_6] : memref<128x128xbf16, #tpu.memory_space<vmem>>, vector<128x128xbf16>
    %cst_7 = arith.constant dense<0.000000e+00> : vector<16x128xf32>
    %10 = tpu.matmul %8, %9, %cst_7 {dimension_numbers = #tpu.dot_dimension_numbers<[1], [0], [0], [1], [0, 0, 1, 1], [], []>} : vector<16x128xbf16>, vector<128x128xbf16>, vector<16x128xf32> -> vector<16x128xf32>
    %c0_8 = arith.constant 0 : index
    %c0_9 = arith.constant 0 : index
    %11 = vector.load %arg5[%c0_8, %c0_9] : memref<1x128xf32, #tpu.memory_space<vmem>>, vector<1x128xf32>
    %12 = vector.broadcast %11 : vector<1x128xf32> to vector<16x128xf32>
    %13 = arith.addf %10, %12 : vector<16x128xf32>
    %14 = math.tanh %13 : vector<16x128xf32>
    %15 = arith.truncf %14 : vector<16x128xf32> to vector<16x128xbf16>
    %c0_10 = arith.constant 0 : index
    %c0_11 = arith.constant 0 : index
    %16 = vector.load %arg6[%c0_10, %c0_11] : memref<128x128xbf16, #tpu.memory_space<vmem>>, vector<128x128xbf16>
    %cst_12 = arith.constant dense<0.000000e+00> : vector<16x128xf32>
    %17 = tpu.matmul %15, %16, %cst_12 {dimension_numbers = #tpu.dot_dimension_numbers<[1], [0], [0], [1], [0, 0, 1, 1], [], []>} : vector<16x128xbf16>, vector<128x128xbf16>, vector<16x128xf32> -> vector<16x128xf32>
    %c0_13 = arith.constant 0 : index
    %c0_14 = arith.constant 0 : index
    %18 = vector.load %arg7[%c0_13, %c0_14] : memref<1x128xf32, #tpu.memory_space<vmem>>, vector<1x128xf32>
    %19 = vector.broadcast %18 : vector<1x128xf32> to vector<16x128xf32>
    %20 = arith.addf %17, %19 : vector<16x128xf32>
    %21 = arith.truncf %20 : vector<16x128xf32> to vector<16x128xbf16>
    %c0_15 = arith.constant 0 : index
    %c0_16 = arith.constant 0 : index
    %22 = vector.load %arg8[%c0_15, %c0_16] : memref<16x128xbf16, #tpu.memory_space<vmem>>, vector<16x128xbf16>
    tpu.vector_store %arg8[%c0_15, %c0_16], %21 {strides = array<i32>} : memref<16x128xbf16, #tpu.memory_space<vmem>>, vector<16x128xbf16>,
    return
  }
  func.func @transform_0(%arg0: i32) -> (i32, i32) {
    %c0_i32 = arith.constant 0 : i32
    %c0_i32_0 = arith.constant 0 : i32
    return %arg0, %c0_i32 : i32, i32
  }
  func.func @transform_1(%arg0: i32) -> (i32, i32) {
    %c0_i32 = arith.constant 0 : i32
    %c0_i32_0 = arith.constant 0 : i32
    %c0_i32_1 = arith.constant 0 : i32
    return %c0_i32, %c0_i32_0 : i32, i32
  }
  func.func @transform_2(%arg0: i32) -> (i32, i32) {
    %c0_i32 = arith.constant 0 : i32
    %c0_i32_0 = arith.constant 0 : i32
    %c0_i32_1 = arith.constant 0 : i32
    return %c0_i32, %c0_i32_0 : i32, i32
  }
  func.func @transform_3(%arg0: i32) -> (i32, i32) {
    %c0_i32 = arith.constant 0 : i32
    %c0_i32_0 = arith.constant 0 : i32
    %c0_i32_1 = arith.constant 0 : i32
    return %c0_i32, %c0_i32_0 : i32, i32
  }
  func.func @transform_4(%arg0: i32) -> (i32, i32) {
    %c0_i32 = arith.constant 0 : i32
    %c0_i32_0 = arith.constant 0 : i32
    %c0_i32_1 = arith.constant 0 : i32
    return %c0_i32, %c0_i32_0 : i32, i32
  }
  func.func @transform_5(%arg0: i32) -> (i32, i32) {
    %c0_i32 = arith.constant 0 : i32
    %c0_i32_0 = arith.constant 0 : i32
    %c0_i32_1 = arith.constant 0 : i32
    return %c0_i32, %c0_i32_0 : i32, i32
  }
  func.func @transform_6(%arg0: i32) -> (i32, i32) {
    %c0_i32 = arith.constant 0 : i32
    %c0_i32_0 = arith.constant 0 : i32
    %c0_i32_1 = arith.constant 0 : i32
    return %c0_i32, %c0_i32_0 : i32, i32
  }
  func.func @transform_7(%arg0: i32) -> (i32, i32) {
    %c0_i32 = arith.constant 0 : i32
    %c0_i32_0 = arith.constant 0 : i32
    return %arg0, %c0_i32 : i32, i32
  }
}

module attributes {stable_mosaic.version = 11 : i64} {
  func.func @generator_kernel(%arg0: i32, %arg1: memref<16x16xf32, #tpu.memory_space<vmem>>, %arg2: memref<16x128xbf16, #tpu.memory_space<vmem>>, %arg3: memref<1x128xf32, #tpu.memory_space<vmem>>, %arg4: memref<128x128xbf16, #tpu.memory_space<vmem>>, %arg5: memref<1x128xf32, #tpu.memory_space<vmem>>, %arg6: memref<128x128xbf16, #tpu.memory_space<vmem>>, %arg7: memref<1x128xf32, #tpu.memory_space<vmem>>, %arg8: memref<16x128xbf16, #tpu.memory_space<vmem>>) attributes {dimension_semantics = [#tpu.dimension_semantics<parallel>], iteration_bounds = array<i64: 1>, scalar_prefetch = 0 : i64, scratch_operands = 0 : i64, tpu.core_type = #tpu.core_type<tc>, window_params = [{transform_indices = @transform_0, window_bounds = array<i64: 16, 16>}, {pipeline_mode = #tpu.pipeline_mode<synchronous>, transform_indices = @transform_1, window_bounds = array<i64: 16, 128>}, {pipeline_mode = #tpu.pipeline_mode<synchronous>, transform_indices = @transform_2, window_bounds = array<i64: 1, 128>}, {pipeline_mode = #tpu.pipeline_mode<synchronous>, transform_indices = @transform_3, window_bounds = array<i64: 128, 128>}, {pipeline_mode = #tpu.pipeline_mode<synchronous>, transform_indices = @transform_4, window_bounds = array<i64: 1, 128>}, {pipeline_mode = #tpu.pipeline_mode<synchronous>, transform_indices = @transform_5, window_bounds = array<i64: 128, 128>}, {pipeline_mode = #tpu.pipeline_mode<synchronous>, transform_indices = @transform_6, window_bounds = array<i64: 1, 128>}, {transform_indices = @transform_7, window_bounds = array<i64: 16, 128>}]} {
    %c0 = arith.constant 0 : index
    %c0_0 = arith.constant 0 : index
    %0 = vector.load %arg1[%c0, %c0_0] : memref<16x16xf32, #tpu.memory_space<vmem>>, vector<16x16xf32>
    %1 = arith.truncf %0 : vector<16x16xf32> to vector<16x16xbf16>
    %c0_1 = arith.constant 0 : index
    %c0_2 = arith.constant 0 : index
    %2 = vector.load %arg2[%c0_1, %c0_2] : memref<16x128xbf16, #tpu.memory_space<vmem>>, vector<16x128xbf16>
    %cst = arith.constant dense<0.000000e+00> : vector<16x128xf32>
    %3 = tpu.matmul %1, %2, %cst {dimension_numbers = #tpu.dot_dimension_numbers<[1], [0], [0], [1], [0, 0, 1, 1], [], []>} : vector<16x16xbf16>, vector<16x128xbf16>, vector<16x128xf32> -> vector<16x128xf32>
    %c0_3 = arith.constant 0 : index
    %c0_4 = arith.constant 0 : index
    %4 = vector.load %arg3[%c0_3, %c0_4] : memref<1x128xf32, #tpu.memory_space<vmem>>, vector<1x128xf32>
    %5 = vector.broadcast %4 : vector<1x128xf32> to vector<16x128xf32>
    %6 = arith.addf %3, %5 : vector<16x128xf32>
    %7 = math.tanh %6 : vector<16x128xf32>
    %8 = arith.truncf %7 : vector<16x128xf32> to vector<16x128xbf16>
    %c0_5 = arith.constant 0 : index
    %c0_6 = arith.constant 0 : index
    %9 = vector.load %arg4[%c0_5, %c0_6] : memref<128x128xbf16, #tpu.memory_space<vmem>>, vector<128x128xbf16>
    %cst_7 = arith.constant dense<0.000000e+00> : vector<16x128xf32>
    %10 = tpu.matmul %8, %9, %cst_7 {dimension_numbers = #tpu.dot_dimension_numbers<[1], [0], [0], [1], [0, 0, 1, 1], [], []>} : vector<16x128xbf16>, vector<128x128xbf16>, vector<16x128xf32> -> vector<16x128xf32>
    %c0_8 = arith.constant 0 : index
    %c0_9 = arith.constant 0 : index
    %11 = vector.load %arg5[%c0_8, %c0_9] : memref<1x128xf32, #tpu.memory_space<vmem>>, vector<1x128xf32>
    %12 = vector.broadcast %11 : vector<1x128xf32> to vector<16x128xf32>
    %13 = arith.addf %10, %12 : vector<16x128xf32>
    %14 = math.tanh %13 : vector<16x128xf32>
    %15 = arith.truncf %14 : vector<16x128xf32> to vector<16x128xbf16>
    %c0_10 = arith.constant 0 : index
    %c0_11 = arith.constant 0 : index
    %16 = vector.load %arg6[%c0_10, %c0_11] : memref<128x128xbf16, #tpu.memory_space<vmem>>, vector<128x128xbf16>
    %cst_12 = arith.constant dense<0.000000e+00> : vector<16x128xf32>
    %17 = tpu.matmul %15, %16, %cst_12 {dimension_numbers = #tpu.dot_dimension_numbers<[1], [0], [0], [1], [0, 0, 1, 1], [], []>} : vector<16x128xbf16>, vector<128x128xbf16>, vector<16x128xf32> -> vector<16x128xf32>
    %c0_13 = arith.constant 0 : index
    %c0_14 = arith.constant 0 : index
    %18 = vector.load %arg7[%c0_13, %c0_14] : memref<1x128xf32, #tpu.memory_space<vmem>>, vector<1x128xf32>
    %19 = vector.broadcast %18 : vector<1x128xf32> to vector<16x128xf32>
    %20 = arith.addf %17, %19 : vector<16x128xf32>
    %21 = arith.truncf %20 : vector<16x128xf32> to vector<16x128xbf16>
    %c0_15 = arith.constant 0 : index
    %c0_16 = arith.constant 0 : index
    %22 = vector.load %arg8[%c0_15, %c0_16] : memref<16x128xbf16, #tpu.memory_space<vmem>>, vector<16x128xbf16>
    tpu.vector_store %arg8[%c0_15, %c0_16], %21 {strides = array<i32>} : memref<16x128xbf16, #tpu.memory_space<vmem>>, vector<16x128xbf16>,
    return
  }
  func.func @transform_0(%arg0: i32) -> (i32, i32) {
    %c0_i32 = arith.constant 0 : i32
    %c0_i32_0 = arith.constant 0 : i32
    return %arg0, %c0_i32 : i32, i32
  }
  func.func @transform_1(%arg0: i32) -> (i32, i32) {
    %c0_i32 = arith.constant 0 : i32
    %c0_i32_0 = arith.constant 0 : i32
    %c0_i32_1 = arith.constant 0 : i32
    return %c0_i32, %c0_i32_0 : i32, i32
  }
  func.func @transform_2(%arg0: i32) -> (i32, i32) {
    %c0_i32 = arith.constant 0 : i32
    %c0_i32_0 = arith.constant 0 : i32
    %c0_i32_1 = arith.constant 0 : i32
    return %c0_i32, %c0_i32_0 : i32, i32
  }
  func.func @transform_3(%arg0: i32) -> (i32, i32) {
    %c0_i32 = arith.constant 0 : i32
    %c0_i32_0 = arith.constant 0 : i32
    %c0_i32_1 = arith.constant 0 : i32
    return %c0_i32, %c0_i32_0 : i32, i32
  }
  func.func @transform_4(%arg0: i32) -> (i32, i32) {
    %c0_i32 = arith.constant 0 : i32
    %c0_i32_0 = arith.constant 0 : i32
    %c0_i32_1 = arith.constant 0 : i32
    return %c0_i32, %c0_i32_0 : i32, i32
  }
  func.func @transform_5(%arg0: i32) -> (i32, i32) {
    %c0_i32 = arith.constant 0 : i32
    %c0_i32_0 = arith.constant 0 : i32
    %c0_i32_1 = arith.constant 0 : i32
    return %c0_i32, %c0_i32_0 : i32, i32
  }
  func.func @transform_6(%arg0: i32) -> (i32, i32) {
    %c0_i32 = arith.constant 0 : i32
    %c0_i32_0 = arith.constant 0 : i32
    %c0_i32_1 = arith.constant 0 : i32
    return %c0_i32, %c0_i32_0 : i32, i32
  }
  func.func @transform_7(%arg0: i32) -> (i32, i32) {
    %c0_i32 = arith.constant 0 : i32
    %c0_i32_0 = arith.constant 0 : i32
    return %arg0, %c0_i32 : i32, i32
  }
}

</mosaic_0001>

<llo_original>
// kernel: tpu_custom_call.1
$region0: #{tpu_custom_call.1}
  #allocation0 [shape = 'u32[]', space=smem, size = 0x4, offset = 0x4, fixed_abs, tag = 'smem constant byte address 0x4 - core index']
  #allocation1 [shape = 'u32[144,128]{1,0:T(1,128)}', space=vmem, size = 0x12000, scoped, tag = 'internal scratch']
  %s0 = inlined_call_operand.hbm [shape: f32[16,16], index: 0, kind: input, shape index: {}]
  %s1 = inlined_call_operand.hbm [shape: bf16[16,128], index: 1, kind: input, shape index: {}]
  %s2 = inlined_call_operand.vmem [shape: f32[1,128], index: 2, kind: input, shape index: {}]
  %s3 = inlined_call_operand.hbm [shape: bf16[128,128], index: 3, kind: input, shape index: {}]
  %s4 = inlined_call_operand.vmem [shape: f32[1,128], index: 4, kind: input, shape index: {}]
  %s5 = inlined_call_operand.hbm [shape: bf16[128,128], index: 5, kind: input, shape index: {}]
  %s6 = inlined_call_operand.vmem [shape: f32[1,128], index: 6, kind: input, shape index: {}]
  %s7 = inlined_call_operand.hbm [shape: bf16[16,128], index: 7, kind: output, shape index: {}]
  %s8 = sld [smem:[#allocation0]]
  $region54: #{tpu_custom_call.1} parent=0
    _
  %s10 = ssub.s32 1, %s8
  %s11 = scalar_select 0, %s10, %s8
  $region1: #{tpu_custom_call.1} parent=0
    #allocation2 [shape = 'u8[8192]{0}', space=vmem, size = 0x2000, scoped, tag = 'input window, operand 0, single buffered']
    #allocation3 [shape = 's32[1]{0}', space=sflag, size = 0x4, scoped, tag = 'scoped memory for tpu_custom_call.1']
    #allocation4 [shape = 's32[1]{0}', space=sflag, size = 0x4, scoped, tag = 'scoped memory for tpu_custom_call.1']
    #allocation5 [shape = 'u8[4096]{0}', space=vmem, size = 0x1000, scoped, tag = 'input window, operand 1, single buffered']
    #allocation6 [shape = 's32[1]{0}', space=sflag, size = 0x4, scoped, tag = 'scoped memory for tpu_custom_call.1']
    #allocation7 [shape = 'u8[32768]{0}', space=vmem, size = 0x8000, scoped, tag = 'input window, operand 3, single buffered']
    #allocation8 [shape = 'u8[32768]{0}', space=vmem, size = 0x8000, scoped, tag = 'input window, operand 5, single buffered']
    #allocation9 [shape = 's32[1]{0}', space=sflag, size = 0x4, scoped, tag = 'scoped memory for tpu_custom_call.1']
    #allocation10 [shape = 'u8[4096]{0}', space=vmem, size = 0x1000, scoped, tag = 'output window, operand 0, single buffered']
    %12 = vsyncpa [#allocation3], 0
    %13 = vsyncpa [#allocation6], 0
    %14 = vsyncpa [#allocation9], 0
    %15 = vsyncpa [#allocation4], 0
    // Predicated region
    $region2: #{tpu_custom_call.1} parent=1 // pred_check
      _
    $region3: #{tpu_custom_call.1} parent=1 // pred_check_branch
      %17 = sbr.rel (0) target = $region5
    $region4: #{tpu_custom_call.1} parent=1 // pred_region
      %s19 = ssub.s32 256, 256
      %20 = vsyncadd [#allocation3], %s19
      %s21 = sshll.u32 [#allocation2], 4
      %s22 = int_to_ptr.vmem [resolvable:$true] %s21
      %27 = dma.hbm_to_vmem [thread:$0]  %s0, 256, %s22, [#allocation3], 128, 128, 8
    $region5: #{tpu_custom_call.1} parent=1 // pred_fallthru
      _
    // Predicated region
    $region6: #{tpu_custom_call.1} parent=1 // pred_check
      _
    $region7: #{tpu_custom_call.1} parent=1 // pred_check_branch
      %29 = sbr.rel (0) target = $region9
    $region8: #{tpu_custom_call.1} parent=1 // pred_region
      %s31 = ssub.s32 128, 128
      %32 = vsyncadd [#allocation6], %s31
      %s33 = sshll.u32 [#allocation5], 4
      %s34 = int_to_ptr.vmem [resolvable:$true] %s33
      %39 = dma.hbm_to_vmem [thread:$0]  %s1, 128, %s34, [#allocation6], 64, 64, 4
    $region9: #{tpu_custom_call.1} parent=1 // pred_fallthru
      _
    // Predicated region
    $region10: #{tpu_custom_call.1} parent=1 // pred_check
      _
    $region11: #{tpu_custom_call.1} parent=1 // pred_check_branch
      %41 = sbr.rel (0) target = $region13
    $region12: #{tpu_custom_call.1} parent=1 // pred_region
      _
    $region13: #{tpu_custom_call.1} parent=1 // pred_fallthru
      _
    // Predicated region
    $region14: #{tpu_custom_call.1} parent=1 // pred_check
      _
    $region15: #{tpu_custom_call.1} parent=1 // pred_check_branch
      %43 = sbr.rel (0) target = $region17
    $region16: #{tpu_custom_call.1} parent=1 // pred_region
      %s45 = ssub.s32 1024, 1024
      %46 = vsyncadd [#allocation6], %s45
      %s47 = sshll.u32 [#allocation7], 4
      %s48 = int_to_ptr.vmem [resolvable:$true] %s47
      %53 = dma.hbm_to_vmem [thread:$0]  %s3, 1024, %s48, [#allocation6], 64, 64, 4
    $region17: #{tpu_custom_call.1} parent=1 // pred_fallthru
      _
    // Predicated region
    $region18: #{tpu_custom_call.1} parent=1 // pred_check
      _
    $region19: #{tpu_custom_call.1} parent=1 // pred_check_branch
      %55 = sbr.rel (0) target = $region21
    $region20: #{tpu_custom_call.1} parent=1 // pred_region
      _
    $region21: #{tpu_custom_call.1} parent=1 // pred_fallthru
      _
    // Predicated region
    $region22: #{tpu_custom_call.1} parent=1 // pred_check
      _
    $region23: #{tpu_custom_call.1} parent=1 // pred_check_branch
      %57 = sbr.rel (0) target = $region25
    $region24: #{tpu_custom_call.1} parent=1 // pred_region
      %s59 = ssub.s32 1024, 1024
      %60 = vsyncadd [#allocation9], %s59
      %s61 = sshll.u32 [#allocation8], 4
      %s62 = int_to_ptr.vmem [resolvable:$true] %s61
      %67 = dma.hbm_to_vmem [thread:$0]  %s5, 1024, %s62, [#allocation9], 64, 64, 4
    $region25: #{tpu_custom_call.1} parent=1 // pred_fallthru
      _
    // Predicated region
    $region26: #{tpu_custom_call.1} parent=1 // pred_check
      _
    $region27: #{tpu_custom_call.1} parent=1 // pred_check_branch
      %69 = sbr.rel (0) target = $region29
    $region28: #{tpu_custom_call.1} parent=1 // pred_region
      _
    $region29: #{tpu_custom_call.1} parent=1 // pred_fallthru
      _
    // Predicated region
    $region30: #{tpu_custom_call.1} parent=1 // pred_check
      _
    $region31: #{tpu_custom_call.1} parent=1 // pred_check_branch
      %71 = sbr.rel (0) target = $region33
    $region32: #{tpu_custom_call.1} parent=1 // pred_region
      %72 = dma.done [#allocation3], 256
    $region33: #{tpu_custom_call.1} parent=1 // pred_fallthru
      _
    // Predicated region
    $region34: #{tpu_custom_call.1} parent=1 // pred_check
      _
    $region35: #{tpu_custom_call.1} parent=1 // pred_check_branch
      %74 = sbr.rel (0) target = $region37
    $region36: #{tpu_custom_call.1} parent=1 // pred_region
      %75 = dma.done [#allocation6], 128
    $region37: #{tpu_custom_call.1} parent=1 // pred_fallthru
      _
    // Predicated region
    $region38: #{tpu_custom_call.1} parent=1 // pred_check
      _
    $region39: #{tpu_custom_call.1} parent=1 // pred_check_branch
      %77 = sbr.rel (0) target = $region41
    $region40: #{tpu_custom_call.1} parent=1 // pred_region
      %78 = dma.done [#allocation6], 1024
    $region41: #{tpu_custom_call.1} parent=1 // pred_fallthru
      _
    // Predicated region
    $region42: #{tpu_custom_call.1} parent=1 // pred_check
      _
    $region43: #{tpu_custom_call.1} parent=1 // pred_check_branch
      %80 = sbr.rel (0) target = $region45
    $region44: #{tpu_custom_call.1} parent=1 // pred_region
      %81 = dma.done [#allocation9], 1024
    $region45: #{tpu_custom_call.1} parent=1 // pred_fallthru
      _
    %v83 = vld [vmem:[#allocation2] sm:$0xff]
    %v84 = vld [vmem:[#allocation2 + $0x8] sm:$0xff]
    %v85 = vpack.c.bf16 %v84, %v83
    %v86 = vld [vmem:[#allocation5] sm:$0xf]
    %v87 = vld [vmem:[#allocation5 + $0x4] sm:$0xf]
    %v88 = vld [vmem:[%s2] sm:$0x1]
    %v90 = vlaneseq
    %v91 = vshrl.u32 %v90, 7
    %v92 = vsub.s32 0, %v91
    %v93 = vrot.slane %v88, %v92
    %v97 = vunpack.c.l.b16 %v86
    %v98 = vunpack.c.l.b16 %v87
    %v99 = vpack.c.b16 %v98, %v97
    %vm101 = vcmask 130048
    %v103 = vsel %vm101, %v85, 0
    %105 = vmatprep.subr.bf16.mxu0 0
    %106 = vmatpush1.bf16.msra.mxu0 0
    %107 = vmatprep.subr.bf16.mxu0 0
    %108 = vmatpush1.bf16.msra.mxu0 0
    %109 = vmatprep.subr.bf16.mxu0 0
    %110 = vmatpush1.bf16.msra.mxu0 0
    %111 = vmatprep.subr.bf16.mxu0 0
    %112 = vmatpush1.bf16.msra.mxu0 0
    %113 = vmatprep.subr.bf16.mxu0 0
    %114 = vmatpush1.bf16.msra.mxu0 0
    %115 = vmatprep.subr.bf16.mxu0 0
    %116 = vmatpush1.bf16.msra.mxu0 0
    %117 = vmatprep.subr.bf16.mxu0 0
    %118 = vmatpush1.bf16.msra.mxu0 0
    %119 = vmatprep.subr.bf16.mxu0 0
    %120 = vmatpush1.bf16.msra.mxu0 %v99
    %121 = vmatprep.subr.bf16.mxu0 0
    %122 = vmatpush2.bf16.msra.mxu0 0
    %123 = vmatprep.subr.bf16.mxu0 0
    %124 = vmatpush2.bf16.msra.mxu0 0
    %125 = vmatprep.subr.bf16.mxu0 0
    %126 = vmatpush2.bf16.msra.mxu0 0
    %127 = vmatprep.subr.bf16.mxu0 0
    %128 = vmatpush2.bf16.msra.mxu0 0
    %129 = vmatprep.subr.bf16.mxu0 0
    %130 = vmatpush2.bf16.msra.mxu0 0
    %131 = vmatprep.subr.bf16.mxu0 0
    %132 = vmatpush2.bf16.msra.mxu0 0
    %133 = vmatprep.subr.bf16.mxu0 0
    %134 = vmatpush2.bf16.msra.mxu0 0
    %135 = vmatprep.subr.bf16.mxu0 0
    %136 = vmatpush2.bf16.msra.mxu0 0
    %137 = vmatprep.mubr.bf16.mxu0 0
    %138 = vmatmul.mubr.bf16.gmra.mxu0 %v103
    %v139 = vpop.f32.mrf.mxu0
    %v140 = vadd.f32 %v93, %v139
    %v141 = vpop.f32.mrf.mxu0
    %v142 = vpop.f32.mrf.mxu0
    %v143 = vadd.f32 %v93, %v142
    %v144 = vpop.f32.mrf.mxu0
    %145 = vdwg.mxu0
    %v146 = vtanh.pop %v140
    %v147 = vtanh.pop %v143
    %v148 = vpack.c.bf16 %v147, %v146
    %v149 = vld [vmem:[#allocation7] sm:$0xf]
    %v150 = vld [vmem:[#allocation7 + $0x4] sm:$0xf]
    %v151 = vld [vmem:[#allocation7 + $0x8] sm:$0xf]
    %v152 = vld [vmem:[#allocation7 + $0xc] sm:$0xf]
    %v153 = vld [vmem:[#allocation7 + $0x10] sm:$0xf]
    %v154 = vld [vmem:[#allocation7 + $0x14] sm:$0xf]
    %v155 = vld [vmem:[#allocation7 + $0x18] sm:$0xf]
    %v156 = vld [vmem:[#allocation7 + $0x1c] sm:$0xf]
    %v157 = vld [vmem:[#allocation7 + $0x20] sm:$0xf]
    %v158 = vld [vmem:[#allocation7 + $0x24] sm:$0xf]
    %v159 = vld [vmem:[#allocation7 + $0x28] sm:$0xf]
    %v160 = vld [vmem:[#allocation7 + $0x2c] sm:$0xf]
    %v161 = vld [vmem:[#allocation7 + $0x30] sm:$0xf]
    %v162 = vld [vmem:[#allocation7 + $0x34] sm:$0xf]
    %v163 = vld [vmem:[#allocation7 + $0x38] sm:$0xf]
    %v164 = vld [vmem:[#allocation7 + $0x3c] sm:$0xf]
    %v165 = vld [vmem:[%s4] sm:$0x1]
    %v167 = vlaneseq
    %v168 = vshrl.u32 %v167, 7
    %v169 = vsub.s32 0, %v168
    %v170 = vrot.slane %v165, %v169
    %v188 = vunpack.c.l.b16 %v149
    %v189 = vunpack.c.l.b16 %v150
    %v190 = vunpack.c.l.b16 %v151
    %v191 = vunpack.c.l.b16 %v152
    %v192 = vunpack.c.l.b16 %v153
    %v193 = vunpack.c.l.b16 %v154
    %v194 = vunpack.c.l.b16 %v155
    %v195 = vunpack.c.l.b16 %v156
    %v196 = vunpack.c.l.b16 %v157
    %v197 = vunpack.c.l.b16 %v158
    %v198 = vunpack.c.l.b16 %v159
    %v199 = vunpack.c.l.b16 %v160
    %v200 = vunpack.c.l.b16 %v161
    %v201 = vunpack.c.l.b16 %v162
    %v202 = vunpack.c.l.b16 %v163
    %v203 = vunpack.c.l.b16 %v164
    %v204 = vpack.c.b16 %v189, %v188
    %v205 = vpack.c.b16 %v191, %v190
    %v206 = vpack.c.b16 %v193, %v192
    %v207 = vpack.c.b16 %v195, %v194
    %v208 = vpack.c.b16 %v197, %v196
    %v209 = vpack.c.b16 %v199, %v198
    %v210 = vpack.c.b16 %v201, %v200
    %v211 = vpack.c.b16 %v203, %v202
    %220 = vmatprep.subr.bf16.mxu0 0
    %221 = vmatpush1.bf16.msra.mxu0 %v211
    %222 = vmatprep.subr.bf16.mxu0 0
    %223 = vmatpush1.bf16.msra.mxu0 %v210
    %224 = vmatprep.subr.bf16.mxu0 0
    %225 = vmatpush1.bf16.msra.mxu0 %v209
    %226 = vmatprep.subr.bf16.mxu0 0
    %227 = vmatpush1.bf16.msra.mxu0 %v208
    %228 = vmatprep.subr.bf16.mxu0 0
    %229 = vmatpush1.bf16.msra.mxu0 %v207
    %230 = vmatprep.subr.bf16.mxu0 0
    %231 = vmatpush1.bf16.msra.mxu0 %v206
    %232 = vmatprep.subr.bf16.mxu0 0
    %233 = vmatpush1.bf16.msra.mxu0 %v205
    %234 = vmatprep.subr.bf16.mxu0 0
    %235 = vmatpush1.bf16.msra.mxu0 %v204
    %236 = vmatprep.subr.bf16.mxu0 0
    %237 = vmatpush2.bf16.msra.mxu0 0
    %238 = vmatprep.subr.bf16.mxu0 0
    %239 = vmatpush2.bf16.msra.mxu0 0
    %240 = vmatprep.subr.bf16.mxu0 0
    %241 = vmatpush2.bf16.msra.mxu0 0
    %242 = vmatprep.subr.bf16.mxu0 0
    %243 = vmatpush2.bf16.msra.mxu0 0
    %244 = vmatprep.subr.bf16.mxu0 0
    %245 = vmatpush2.bf16.msra.mxu0 0
    %246 = vmatprep.subr.bf16.mxu0 0
    %247 = vmatpush2.bf16.msra.mxu0 0
    %248 = vmatprep.subr.bf16.mxu0 0
    %249 = vmatpush2.bf16.msra.mxu0 0
    %250 = vmatprep.subr.bf16.mxu0 0
    %251 = vmatpush2.bf16.msra.mxu0 0
    %252 = vmatprep.mubr.bf16.mxu0 0
    %253 = vmatmul.mubr.bf16.gmra.mxu0 %v148
    %v254 = vpop.f32.mrf.mxu0
    %v255 = vadd.f32 %v170, %v254
    %v256 = vpop.f32.mrf.mxu0
    %v257 = vpop.f32.mrf.mxu0
    %v258 = vadd.f32 %v170, %v257
    %v259 = vpop.f32.mrf.mxu0
    %260 = vdwg.mxu0
    %v261 = vtanh.pop %v255
    %v262 = vtanh.pop %v258
    %v263 = vpack.c.bf16 %v262, %v261
    %v264 = vld [vmem:[#allocation8] sm:$0xf]
    %v265 = vld [vmem:[#allocation8 + $0x4] sm:$0xf]
    %v266 = vld [vmem:[#allocation8 + $0x8] sm:$0xf]
    %v267 = vld [vmem:[#allocation8 + $0xc] sm:$0xf]
    %v268 = vld [vmem:[#allocation8 + $0x10] sm:$0xf]
    %v269 = vld [vmem:[#allocation8 + $0x14] sm:$0xf]
    %v270 = vld [vmem:[#allocation8 + $0x18] sm:$0xf]
    %v271 = vld [vmem:[#allocation8 + $0x1c] sm:$0xf]
    %v272 = vld [vmem:[#allocation8 + $0x20] sm:$0xf]
    %v273 = vld [vmem:[#allocation8 + $0x24] sm:$0xf]
    %v274 = vld [vmem:[#allocation8 + $0x28] sm:$0xf]
    %v275 = vld [vmem:[#allocation8 + $0x2c] sm:$0xf]
    %v276 = vld [vmem:[#allocation8 + $0x30] sm:$0xf]
    %v277 = vld [vmem:[#allocation8 + $0x34] sm:$0xf]
    %v278 = vld [vmem:[#allocation8 + $0x38] sm:$0xf]
    %v279 = vld [vmem:[#allocation8 + $0x3c] sm:$0xf]
    %v280 = vld [vmem:[%s6] sm:$0x1]
    %v282 = vlaneseq
    %v283 = vshrl.u32 %v282, 7
    %v284 = vsub.s32 0, %v283
    %v285 = vrot.slane %v280, %v284
    %v303 = vunpack.c.l.b16 %v264
    %v304 = vunpack.c.l.b16 %v265
    %v305 = vunpack.c.l.b16 %v266
    %v306 = vunpack.c.l.b16 %v267
    %v307 = vunpack.c.l.b16 %v268
    %v308 = vunpack.c.l.b16 %v269
    %v309 = vunpack.c.l.b16 %v270
    %v310 = vunpack.c.l.b16 %v271
    %v311 = vunpack.c.l.b16 %v272
    %v312 = vunpack.c.l.b16 %v273
    %v313 = vunpack.c.l.b16 %v274
    %v314 = vunpack.c.l.b16 %v275
    %v315 = vunpack.c.l.b16 %v276
    %v316 = vunpack.c.l.b16 %v277
    %v317 = vunpack.c.l.b16 %v278
    %v318 = vunpack.c.l.b16 %v279
    %v319 = vpack.c.b16 %v304, %v303
    %v320 = vpack.c.b16 %v306, %v305
    %v321 = vpack.c.b16 %v308, %v307
    %v322 = vpack.c.b16 %v310, %v309
    %v323 = vpack.c.b16 %v312, %v311
    %v324 = vpack.c.b16 %v314, %v313
    %v325 = vpack.c.b16 %v316, %v315
    %v326 = vpack.c.b16 %v318, %v317
    %335 = vmatprep.subr.bf16.mxu0 0
    %336 = vmatpush1.bf16.msra.mxu0 %v326
    %337 = vmatprep.subr.bf16.mxu0 0
    %338 = vmatpush1.bf16.msra.mxu0 %v325
    %339 = vmatprep.subr.bf16.mxu0 0
    %340 = vmatpush1.bf16.msra.mxu0 %v324
    %341 = vmatprep.subr.bf16.mxu0 0
    %342 = vmatpush1.bf16.msra.mxu0 %v323
    %343 = vmatprep.subr.bf16.mxu0 0
    %344 = vmatpush1.bf16.msra.mxu0 %v322
    %345 = vmatprep.subr.bf16.mxu0 0
    %346 = vmatpush1.bf16.msra.mxu0 %v321
    %347 = vmatprep.subr.bf16.mxu0 0
    %348 = vmatpush1.bf16.msra.mxu0 %v320
    %349 = vmatprep.subr.bf16.mxu0 0
    %350 = vmatpush1.bf16.msra.mxu0 %v319
    %351 = vmatprep.subr.bf16.mxu0 0
    %352 = vmatpush2.bf16.msra.mxu0 0
    %353 = vmatprep.subr.bf16.mxu0 0
    %354 = vmatpush2.bf16.msra.mxu0 0
    %355 = vmatprep.subr.bf16.mxu0 0
    %356 = vmatpush2.bf16.msra.mxu0 0
    %357 = vmatprep.subr.bf16.mxu0 0
    %358 = vmatpush2.bf16.msra.mxu0 0
    %359 = vmatprep.subr.bf16.mxu0 0
    %360 = vmatpush2.bf16.msra.mxu0 0
    %361 = vmatprep.subr.bf16.mxu0 0
    %362 = vmatpush2.bf16.msra.mxu0 0
    %363 = vmatprep.subr.bf16.mxu0 0
    %364 = vmatpush2.bf16.msra.mxu0 0
    %365 = vmatprep.subr.bf16.mxu0 0
    %366 = vmatpush2.bf16.msra.mxu0 0
    %367 = vmatprep.mubr.bf16.mxu0 0
    %368 = vmatmul.mubr.bf16.gmra.mxu0 %v263
    %v369 = vpop.f32.mrf.mxu0
    %v370 = vadd.f32 %v285, %v369
    %v371 = vpop.f32.mrf.mxu0
    %v372 = vpop.f32.mrf.mxu0
    %v373 = vadd.f32 %v285, %v372
    %v374 = vpop.f32.mrf.mxu0
    %375 = vdwg.mxu0
    %v376 = vpack.c.bf16 %v373, %v370
    %v378 = vunpack.c.l.b16 %v376
    %v379 = vunpack.c.h.b16 %v376
    %v380 = vpack.c.b16 %v378, %v378
    %v381 = vpack.c.b16 %v379, %v379
    %384 = vst [vmem:[#allocation10] sm:$0xf] %v380
    %385 = vst [vmem:[#allocation10 + $0x4] sm:$0xf] %v381
    // Predicated region
    $region46: #{tpu_custom_call.1} parent=1 // pred_check
      _
    $region47: #{tpu_custom_call.1} parent=1 // pred_check_branch
      %387 = sbr.rel (0) target = $region49
    $region48: #{tpu_custom_call.1} parent=1 // pred_region
      %s389 = ssub.s32 128, 128
      %390 = vsyncadd [#allocation4], %s389
      %s391 = sshll.u32 [#allocation10], 4
      %s392 = int_to_ptr.vmem [resolvable:$true] %s391
      %397 = dma.vmem_to_hbm [thread:$0]  %s392, 128, %s7, [#allocation4], 64, 64, 4
    $region49: #{tpu_custom_call.1} parent=1 // pred_fallthru
      _
    // Predicated region
    $region50: #{tpu_custom_call.1} parent=1 // pred_check
      _
    $region51: #{tpu_custom_call.1} parent=1 // pred_check_branch
      %399 = sbr.rel (0) target = $region53
    $region52: #{tpu_custom_call.1} parent=1 // pred_region
      %400 = dma.done [#allocation4], 128
    $region53: #{tpu_custom_call.1} parent=1 // pred_fallthru
      _
    %401 = vsyncpa [#allocation3], 1
    %402 = vsyncpa [#allocation6], 1
    %403 = vsyncpa [#allocation9], 1
    %404 = vsyncpa [#allocation4], 1

// kernel: tpu_custom_call.1
$region0: #{tpu_custom_call.1}
  #allocation0 [shape = 'u32[]', space=smem, size = 0x4, offset = 0x4, fixed_abs, tag = 'smem constant byte address 0x4 - core index']
  #allocation1 [shape = 'u32[144,128]{1,0:T(1,128)}', space=vmem, size = 0x12000, scoped, tag = 'internal scratch']
  %s0 = inlined_call_operand.hbm [shape: f32[16,16], index: 0, kind: input, shape index: {}]
  %s1 = inlined_call_operand.hbm [shape: bf16[16,128], index: 1, kind: input, shape index: {}]
  %s2 = inlined_call_operand.vmem [shape: f32[1,128], index: 2, kind: input, shape index: {}]
  %s3 = inlined_call_operand.hbm [shape: bf16[128,128], index: 3, kind: input, shape index: {}]
  %s4 = inlined_call_operand.vmem [shape: f32[1,128], index: 4, kind: input, shape index: {}]
  %s5 = inlined_call_operand.hbm [shape: bf16[128,128], index: 5, kind: input, shape index: {}]
  %s6 = inlined_call_operand.vmem [shape: f32[1,128], index: 6, kind: input, shape index: {}]
  %s7 = inlined_call_operand.hbm [shape: bf16[16,128], index: 7, kind: output, shape index: {}]
  %s8 = sld [smem:[#allocation0]]
  $region54: #{tpu_custom_call.1} parent=0
    _
  %s10 = ssub.s32 1, %s8
  %s11 = scalar_select 0, %s10, %s8
  $region1: #{tpu_custom_call.1} parent=0
    #allocation2 [shape = 'u8[8192]{0}', space=vmem, size = 0x2000, scoped, tag = 'input window, operand 0, single buffered']
    #allocation3 [shape = 's32[1]{0}', space=sflag, size = 0x4, scoped, tag = 'scoped memory for tpu_custom_call.1']
    #allocation4 [shape = 's32[1]{0}', space=sflag, size = 0x4, scoped, tag = 'scoped memory for tpu_custom_call.1']
    #allocation5 [shape = 'u8[4096]{0}', space=vmem, size = 0x1000, scoped, tag = 'input window, operand 1, single buffered']
    #allocation6 [shape = 's32[1]{0}', space=sflag, size = 0x4, scoped, tag = 'scoped memory for tpu_custom_call.1']
    #allocation7 [shape = 'u8[32768]{0}', space=vmem, size = 0x8000, scoped, tag = 'input window, operand 3, single buffered']
    #allocation8 [shape = 'u8[32768]{0}', space=vmem, size = 0x8000, scoped, tag = 'input window, operand 5, single buffered']
    #allocation9 [shape = 's32[1]{0}', space=sflag, size = 0x4, scoped, tag = 'scoped memory for tpu_custom_call.1']
    #allocation10 [shape = 'u8[4096]{0}', space=vmem, size = 0x1000, scoped, tag = 'output window, operand 0, single buffered']
    %12 = vsyncpa [#allocation3], 0
    %13 = vsyncpa [#allocation6], 0
    %14 = vsyncpa [#allocation9], 0
    %15 = vsyncpa [#allocation4], 0
    // Predicated region
    $region2: #{tpu_custom_call.1} parent=1 // pred_check
      _
    $region3: #{tpu_custom_call.1} parent=1 // pred_check_branch
      %17 = sbr.rel (0) target = $region5
    $region4: #{tpu_custom_call.1} parent=1 // pred_region
      %s19 = ssub.s32 256, 256
      %20 = vsyncadd [#allocation3], %s19
      %s21 = sshll.u32 [#allocation2], 4
      %s22 = int_to_ptr.vmem [resolvable:$true] %s21
      %27 = dma.hbm_to_vmem [thread:$0]  %s0, 256, %s22, [#allocation3], 128, 128, 8
    $region5: #{tpu_custom_call.1} parent=1 // pred_fallthru
      _
    // Predicated region
    $region6: #{tpu_custom_call.1} parent=1 // pred_check
      _
    $region7: #{tpu_custom_call.1} parent=1 // pred_check_branch
      %29 = sbr.rel (0) target = $region9
    $region8: #{tpu_custom_call.1} parent=1 // pred_region
      %s31 = ssub.s32 128, 128
      %32 = vsyncadd [#allocation6], %s31
      %s33 = sshll.u32 [#allocation5], 4
      %s34 = int_to_ptr.vmem [resolvable:$true] %s33
      %39 = dma.hbm_to_vmem [thread:$0]  %s1, 128, %s34, [#allocation6], 64, 64, 4
    $region9: #{tpu_custom_call.1} parent=1 // pred_fallthru
      _
    // Predicated region
    $region10: #{tpu_custom_call.1} parent=1 // pred_check
      _
    $region11: #{tpu_custom_call.1} parent=1 // pred_check_branch
      %41 = sbr.rel (0) target = $region13
    $region12: #{tpu_custom_call.1} parent=1 // pred_region
      _
    $region13: #{tpu_custom_call.1} parent=1 // pred_fallthru
      _
    // Predicated region
    $region14: #{tpu_custom_call.1} parent=1 // pred_check
      _
    $region15: #{tpu_custom_call.1} parent=1 // pred_check_branch
      %43 = sbr.rel (0) target = $region17
    $region16: #{tpu_custom_call.1} parent=1 // pred_region
      %s45 = ssub.s32 1024, 1024
      %46 = vsyncadd [#allocation6], %s45
      %s47 = sshll.u32 [#allocation7], 4
      %s48 = int_to_ptr.vmem [resolvable:$true] %s47
      %53 = dma.hbm_to_vmem [thread:$0]  %s3, 1024, %s48, [#allocation6], 64, 64, 4
    $region17: #{tpu_custom_call.1} parent=1 // pred_fallthru
      _
    // Predicated region
    $region18: #{tpu_custom_call.1} parent=1 // pred_check
      _
    $region19: #{tpu_custom_call.1} parent=1 // pred_check_branch
      %55 = sbr.rel (0) target = $region21
    $region20: #{tpu_custom_call.1} parent=1 // pred_region
      _
    $region21: #{tpu_custom_call.1} parent=1 // pred_fallthru
      _
    // Predicated region
    $region22: #{tpu_custom_call.1} parent=1 // pred_check
      _
    $region23: #{tpu_custom_call.1} parent=1 // pred_check_branch
      %57 = sbr.rel (0) target = $region25
    $region24: #{tpu_custom_call.1} parent=1 // pred_region
      %s59 = ssub.s32 1024, 1024
      %60 = vsyncadd [#allocation9], %s59
      %s61 = sshll.u32 [#allocation8], 4
      %s62 = int_to_ptr.vmem [resolvable:$true] %s61
      %67 = dma.hbm_to_vmem [thread:$0]  %s5, 1024, %s62, [#allocation9], 64, 64, 4
    $region25: #{tpu_custom_call.1} parent=1 // pred_fallthru
      _
    // Predicated region
    $region26: #{tpu_custom_call.1} parent=1 // pred_check
      _
    $region27: #{tpu_custom_call.1} parent=1 // pred_check_branch
      %69 = sbr.rel (0) target = $region29
    $region28: #{tpu_custom_call.1} parent=1 // pred_region
      _
    $region29: #{tpu_custom_call.1} parent=1 // pred_fallthru
      _
    // Predicated region
    $region30: #{tpu_custom_call.1} parent=1 // pred_check
      _
    $region31: #{tpu_custom_call.1} parent=1 // pred_check_branch
      %71 = sbr.rel (0) target = $region33
    $region32: #{tpu_custom_call.1} parent=1 // pred_region
      %72 = dma.done [#allocation3], 256
    $region33: #{tpu_custom_call.1} parent=1 // pred_fallthru
      _
    // Predicated region
    $region34: #{tpu_custom_call.1} parent=1 // pred_check
      _
    $region35: #{tpu_custom_call.1} parent=1 // pred_check_branch
      %74 = sbr.rel (0) target = $region37
    $region36: #{tpu_custom_call.1} parent=1 // pred_region
      %75 = dma.done [#allocation6], 128
    $region37: #{tpu_custom_call.1} parent=1 // pred_fallthru
      _
    // Predicated region
    $region38: #{tpu_custom_call.1} parent=1 // pred_check
      _
    $region39: #{tpu_custom_call.1} parent=1 // pred_check_branch
      %77 = sbr.rel (0) target = $region41
    $region40: #{tpu_custom_call.1} parent=1 // pred_region
      %78 = dma.done [#allocation6], 1024
    $region41: #{tpu_custom_call.1} parent=1 // pred_fallthru
      _
    // Predicated region
    $region42: #{tpu_custom_call.1} parent=1 // pred_check
      _
    $region43: #{tpu_custom_call.1} parent=1 // pred_check_branch
      %80 = sbr.rel (0) target = $region45
    $region44: #{tpu_custom_call.1} parent=1 // pred_region
      %81 = dma.done [#allocation9], 1024
    $region45: #{tpu_custom_call.1} parent=1 // pred_fallthru
      _
    %v83 = vld [vmem:[#allocation2] sm:$0xff]
    %v84 = vld [vmem:[#allocation2 + $0x8] sm:$0xff]
    %v85 = vpack.c.bf16 %v84, %v83
    %v86 = vld [vmem:[#allocation5] sm:$0xf]
    %v87 = vld [vmem:[#allocation5 + $0x4] sm:$0xf]
    %v88 = vld [vmem:[%s2] sm:$0x1]
    %v90 = vlaneseq
    %v91 = vshrl.u32 %v90, 7
    %v92 = vsub.s32 0, %v91
    %v93 = vrot.slane %v88, %v92
    %v97 = vunpack.c.l.b16 %v86
    %v98 = vunpack.c.l.b16 %v87
    %v99 = vpack.c.b16 %v98, %v97
    %vm101 = vcmask 130048
    %v103 = vsel %vm101, %v85, 0
    %105 = vmatprep.subr.bf16.mxu0 0
    %106 = vmatpush1.bf16.msra.mxu0 0
    %107 = vmatprep.subr.bf16.mxu0 0
    %108 = vmatpush1.bf16.msra.mxu0 0
    %109 = vmatprep.subr.bf16.mxu0 0
    %110 = vmatpush1.bf16.msra.mxu0 0
    %111 = vmatprep.subr.bf16.mxu0 0
    %112 = vmatpush1.bf16.msra.mxu0 0
    %113 = vmatprep.subr.bf16.mxu0 0
    %114 = vmatpush1.bf16.msra.mxu0 0
    %115 = vmatprep.subr.bf16.mxu0 0
    %116 = vmatpush1.bf16.msra.mxu0 0
    %117 = vmatprep.subr.bf16.mxu0 0
    %118 = vmatpush1.bf16.msra.mxu0 0
    %119 = vmatprep.subr.bf16.mxu0 0
    %120 = vmatpush1.bf16.msra.mxu0 %v99
    %121 = vmatprep.subr.bf16.mxu0 0
    %122 = vmatpush2.bf16.msra.mxu0 0
    %123 = vmatprep.subr.bf16.mxu0 0
    %124 = vmatpush2.bf16.msra.mxu0 0
    %125 = vmatprep.subr.bf16.mxu0 0
    %126 = vmatpush2.bf16.msra.mxu0 0
    %127 = vmatprep.subr.bf16.mxu0 0
    %128 = vmatpush2.bf16.msra.mxu0 0
    %129 = vmatprep.subr.bf16.mxu0 0
    %130 = vmatpush2.bf16.msra.mxu0 0
    %131 = vmatprep.subr.bf16.mxu0 0
    %132 = vmatpush2.bf16.msra.mxu0 0
    %133 = vmatprep.subr.bf16.mxu0 0
    %134 = vmatpush2.bf16.msra.mxu0 0
    %135 = vmatprep.subr.bf16.mxu0 0
    %136 = vmatpush2.bf16.msra.mxu0 0
    %137 = vmatprep.mubr.bf16.mxu0 0
    %138 = vmatmul.mubr.bf16.gmra.mxu0 %v103
    %v139 = vpop.f32.mrf.mxu0
    %v140 = vadd.f32 %v93, %v139
    %v141 = vpop.f32.mrf.mxu0
    %v142 = vpop.f32.mrf.mxu0
    %v143 = vadd.f32 %v93, %v142
    %v144 = vpop.f32.mrf.mxu0
    %145 = vdwg.mxu0
    %v146 = vtanh.pop %v140
    %v147 = vtanh.pop %v143
    %v148 = vpack.c.bf16 %v147, %v146
    %v149 = vld [vmem:[#allocation7] sm:$0xf]
    %v150 = vld [vmem:[#allocation7 + $0x4] sm:$0xf]
    %v151 = vld [vmem:[#allocation7 + $0x8] sm:$0xf]
    %v152 = vld [vmem:[#allocation7 + $0xc] sm:$0xf]
    %v153 = vld [vmem:[#allocation7 + $0x10] sm:$0xf]
    %v154 = vld [vmem:[#allocation7 + $0x14] sm:$0xf]
    %v155 = vld [vmem:[#allocation7 + $0x18] sm:$0xf]
    %v156 = vld [vmem:[#allocation7 + $0x1c] sm:$0xf]
    %v157 = vld [vmem:[#allocation7 + $0x20] sm:$0xf]
    %v158 = vld [vmem:[#allocation7 + $0x24] sm:$0xf]
    %v159 = vld [vmem:[#allocation7 + $0x28] sm:$0xf]
    %v160 = vld [vmem:[#allocation7 + $0x2c] sm:$0xf]
    %v161 = vld [vmem:[#allocation7 + $0x30] sm:$0xf]
    %v162 = vld [vmem:[#allocation7 + $0x34] sm:$0xf]
    %v163 = vld [vmem:[#allocation7 + $0x38] sm:$0xf]
    %v164 = vld [vmem:[#allocation7 + $0x3c] sm:$0xf]
    %v165 = vld [vmem:[%s4] sm:$0x1]
    %v167 = vlaneseq
    %v168 = vshrl.u32 %v167, 7
    %v169 = vsub.s32 0, %v168
    %v170 = vrot.slane %v165, %v169
    %v188 = vunpack.c.l.b16 %v149
    %v189 = vunpack.c.l.b16 %v150
    %v190 = vunpack.c.l.b16 %v151
    %v191 = vunpack.c.l.b16 %v152
    %v192 = vunpack.c.l.b16 %v153
    %v193 = vunpack.c.l.b16 %v154
    %v194 = vunpack.c.l.b16 %v155
    %v195 = vunpack.c.l.b16 %v156
    %v196 = vunpack.c.l.b16 %v157
    %v197 = vunpack.c.l.b16 %v158
    %v198 = vunpack.c.l.b16 %v159
    %v199 = vunpack.c.l.b16 %v160
    %v200 = vunpack.c.l.b16 %v161
    %v201 = vunpack.c.l.b16 %v162
    %v202 = vunpack.c.l.b16 %v163
    %v203 = vunpack.c.l.b16 %v164
    %v204 = vpack.c.b16 %v189, %v188
    %v205 = vpack.c.b16 %v191, %v190
    %v206 = vpack.c.b16 %v193, %v192
    %v207 = vpack.c.b16 %v195, %v194
    %v208 = vpack.c.b16 %v197, %v196
    %v209 = vpack.c.b16 %v199, %v198
    %v210 = vpack.c.b16 %v201, %v200
    %v211 = vpack.c.b16 %v203, %v202
    %220 = vmatprep.subr.bf16.mxu0 0
    %221 = vmatpush1.bf16.msra.mxu0 %v211
    %222 = vmatprep.subr.bf16.mxu0 0
    %223 = vmatpush1.bf16.msra.mxu0 %v210
    %224 = vmatprep.subr.bf16.mxu0 0
    %225 = vmatpush1.bf16.msra.mxu0 %v209
    %226 = vmatprep.subr.bf16.mxu0 0
    %227 = vmatpush1.bf16.msra.mxu0 %v208
    %228 = vmatprep.subr.bf16.mxu0 0
    %229 = vmatpush1.bf16.msra.mxu0 %v207
    %230 = vmatprep.subr.bf16.mxu0 0
    %231 = vmatpush1.bf16.msra.mxu0 %v206
    %232 = vmatprep.subr.bf16.mxu0 0
    %233 = vmatpush1.bf16.msra.mxu0 %v205
    %234 = vmatprep.subr.bf16.mxu0 0
    %235 = vmatpush1.bf16.msra.mxu0 %v204
    %236 = vmatprep.subr.bf16.mxu0 0
    %237 = vmatpush2.bf16.msra.mxu0 0
    %238 = vmatprep.subr.bf16.mxu0 0
    %239 = vmatpush2.bf16.msra.mxu0 0
    %240 = vmatprep.subr.bf16.mxu0 0
    %241 = vmatpush2.bf16.msra.mxu0 0
    %242 = vmatprep.subr.bf16.mxu0 0
    %243 = vmatpush2.bf16.msra.mxu0 0
    %244 = vmatprep.subr.bf16.mxu0 0
    %245 = vmatpush2.bf16.msra.mxu0 0
    %246 = vmatprep.subr.bf16.mxu0 0
    %247 = vmatpush2.bf16.msra.mxu0 0
    %248 = vmatprep.subr.bf16.mxu0 0
    %249 = vmatpush2.bf16.msra.mxu0 0
    %250 = vmatprep.subr.bf16.mxu0 0
    %251 = vmatpush2.bf16.msra.mxu0 0
    %252 = vmatprep.mubr.bf16.mxu0 0
    %253 = vmatmul.mubr.bf16.gmra.mxu0 %v148
    %v254 = vpop.f32.mrf.mxu0
    %v255 = vadd.f32 %v170, %v254
    %v256 = vpop.f32.mrf.mxu0
    %v257 = vpop.f32.mrf.mxu0
    %v258 = vadd.f32 %v170, %v257
    %v259 = vpop.f32.mrf.mxu0
    %260 = vdwg.mxu0
    %v261 = vtanh.pop %v255
    %v262 = vtanh.pop %v258
    %v263 = vpack.c.bf16 %v262, %v261
    %v264 = vld [vmem:[#allocation8] sm:$0xf]
    %v265 = vld [vmem:[#allocation8 + $0x4] sm:$0xf]
    %v266 = vld [vmem:[#allocation8 + $0x8] sm:$0xf]
    %v267 = vld [vmem:[#allocation8 + $0xc] sm:$0xf]
    %v268 = vld [vmem:[#allocation8 + $0x10] sm:$0xf]
    %v269 = vld [vmem:[#allocation8 + $0x14] sm:$0xf]
    %v270 = vld [vmem:[#allocation8 + $0x18] sm:$0xf]
    %v271 = vld [vmem:[#allocation8 + $0x1c] sm:$0xf]
    %v272 = vld [vmem:[#allocation8 + $0x20] sm:$0xf]
    %v273 = vld [vmem:[#allocation8 + $0x24] sm:$0xf]
    %v274 = vld [vmem:[#allocation8 + $0x28] sm:$0xf]
    %v275 = vld [vmem:[#allocation8 + $0x2c] sm:$0xf]
    %v276 = vld [vmem:[#allocation8 + $0x30] sm:$0xf]
    %v277 = vld [vmem:[#allocation8 + $0x34] sm:$0xf]
    %v278 = vld [vmem:[#allocation8 + $0x38] sm:$0xf]
    %v279 = vld [vmem:[#allocation8 + $0x3c] sm:$0xf]
    %v280 = vld [vmem:[%s6] sm:$0x1]
    %v282 = vlaneseq
    %v283 = vshrl.u32 %v282, 7
    %v284 = vsub.s32 0, %v283
    %v285 = vrot.slane %v280, %v284
    %v303 = vunpack.c.l.b16 %v264
    %v304 = vunpack.c.l.b16 %v265
    %v305 = vunpack.c.l.b16 %v266
    %v306 = vunpack.c.l.b16 %v267
    %v307 = vunpack.c.l.b16 %v268
    %v308 = vunpack.c.l.b16 %v269
    %v309 = vunpack.c.l.b16 %v270
    %v310 = vunpack.c.l.b16 %v271
    %v311 = vunpack.c.l.b16 %v272
    %v312 = vunpack.c.l.b16 %v273
    %v313 = vunpack.c.l.b16 %v274
    %v314 = vunpack.c.l.b16 %v275
    %v315 = vunpack.c.l.b16 %v276
    %v316 = vunpack.c.l.b16 %v277
    %v317 = vunpack.c.l.b16 %v278
    %v318 = vunpack.c.l.b16 %v279
    %v319 = vpack.c.b16 %v304, %v303
    %v320 = vpack.c.b16 %v306, %v305
    %v321 = vpack.c.b16 %v308, %v307
    %v322 = vpack.c.b16 %v310, %v309
    %v323 = vpack.c.b16 %v312, %v311
    %v324 = vpack.c.b16 %v314, %v313
    %v325 = vpack.c.b16 %v316, %v315
    %v326 = vpack.c.b16 %v318, %v317
    %335 = vmatprep.subr.bf16.mxu0 0
    %336 = vmatpush1.bf16.msra.mxu0 %v326
    %337 = vmatprep.subr.bf16.mxu0 0
    %338 = vmatpush1.bf16.msra.mxu0 %v325
    %339 = vmatprep.subr.bf16.mxu0 0
    %340 = vmatpush1.bf16.msra.mxu0 %v324
    %341 = vmatprep.subr.bf16.mxu0 0
    %342 = vmatpush1.bf16.msra.mxu0 %v323
    %343 = vmatprep.subr.bf16.mxu0 0
    %344 = vmatpush1.bf16.msra.mxu0 %v322
    %345 = vmatprep.subr.bf16.mxu0 0
    %346 = vmatpush1.bf16.msra.mxu0 %v321
    %347 = vmatprep.subr.bf16.mxu0 0
    %348 = vmatpush1.bf16.msra.mxu0 %v320
    %349 = vmatprep.subr.bf16.mxu0 0
    %350 = vmatpush1.bf16.msra.mxu0 %v319
    %351 = vmatprep.subr.bf16.mxu0 0
    %352 = vmatpush2.bf16.msra.mxu0 0
    %353 = vmatprep.subr.bf16.mxu0 0
    %354 = vmatpush2.bf16.msra.mxu0 0
    %355 = vmatprep.subr.bf16.mxu0 0
    %356 = vmatpush2.bf16.msra.mxu0 0
    %357 = vmatprep.subr.bf16.mxu0 0
    %358 = vmatpush2.bf16.msra.mxu0 0
    %359 = vmatprep.subr.bf16.mxu0 0
    %360 = vmatpush2.bf16.msra.mxu0 0
    %361 = vmatprep.subr.bf16.mxu0 0
    %362 = vmatpush2.bf16.msra.mxu0 0
    %363 = vmatprep.subr.bf16.mxu0 0
    %364 = vmatpush2.bf16.msra.mxu0 0
    %365 = vmatprep.subr.bf16.mxu0 0
    %366 = vmatpush2.bf16.msra.mxu0 0
    %367 = vmatprep.mubr.bf16.mxu0 0
    %368 = vmatmul.mubr.bf16.gmra.mxu0 %v263
    %v369 = vpop.f32.mrf.mxu0
    %v370 = vadd.f32 %v285, %v369
    %v371 = vpop.f32.mrf.mxu0
    %v372 = vpop.f32.mrf.mxu0
    %v373 = vadd.f32 %v285, %v372
    %v374 = vpop.f32.mrf.mxu0
    %375 = vdwg.mxu0
    %v376 = vpack.c.bf16 %v373, %v370
    %v378 = vunpack.c.l.b16 %v376
    %v379 = vunpack.c.h.b16 %v376
    %v380 = vpack.c.b16 %v378, %v378
    %v381 = vpack.c.b16 %v379, %v379
    %384 = vst [vmem:[#allocation10] sm:$0xf] %v380
    %385 = vst [vmem:[#allocation10 + $0x4] sm:$0xf] %v381
    // Predicated region
    $region46: #{tpu_custom_call.1} parent=1 // pred_check
      _
    $region47: #{tpu_custom_call.1} parent=1 // pred_check_branch
      %387 = sbr.rel (0) target = $region49
    $region48: #{tpu_custom_call.1} parent=1 // pred_region
      %s389 = ssub.s32 128, 128
      %390 = vsyncadd [#allocation4], %s389
      %s391 = sshll.u32 [#allocation10], 4
      %s392 = int_to_ptr.vmem [resolvable:$true] %s391
      %397 = dma.vmem_to_hbm [thread:$0]  %s392, 128, %s7, [#allocation4], 64, 64, 4
    $region49: #{tpu_custom_call.1} parent=1 // pred_fallthru
      _
    // Predicated region
    $region50: #{tpu_custom_call.1} parent=1 // pred_check
      _
    $region51: #{tpu_custom_call.1} parent=1 // pred_check_branch
      %399 = sbr.rel (0) target = $region53
    $region52: #{tpu_custom_call.1} parent=1 // pred_region
      %400 = dma.done [#allocation4], 128
    $region53: #{tpu_custom_call.1} parent=1 // pred_fallthru
      _
    %401 = vsyncpa [#allocation3], 1
    %402 = vsyncpa [#allocation6], 1
    %403 = vsyncpa [#allocation9], 1
    %404 = vsyncpa [#allocation4], 1

</llo_original>
